<compile_context>
chip_gen: v6e
topology: v6e:2x2x1
jax: 0.10.0
libtpu: 0.0.40
codegen_flags: <defaults>
</compile_context>

<pallas_src>
import jax
import jax.numpy as jnp
from jax.experimental import pallas as pl
from jax.experimental.pallas import tpu as pltpu


# ---------------------------------------------------------------------------
# Path A: HBM->HBM DMA kernel (large H*W), 2-slot lookahead pipeline.
# ---------------------------------------------------------------------------
def _channel_shuffle_dma_kernel(x_hbm, o_hbm, sems):
    """x_hbm: (N, groups, cpg, HW) HBM ref; o_hbm: (N, cpg, groups, HW) HBM ref.

    sems: (n_copies, 2) DMA semaphores -- 2-deep lookahead ring over batches.
    """
    N, groups, cpg, _ = x_hbm.shape

    # Iterate over the smaller of (groups, cpg): fewer DMA descriptors and the
    # contiguous side of each copy is as long as possible.  (For the common
    # ShuffleNet case groups <= cpg: contiguous reads, HW-run strided writes;
    # for groups > cpg it flips so the *writes* are fully contiguous.)
    loop_over_groups = groups <= cpg
    n_copies = groups if loop_over_groups else cpg

    def _copy(n, j, slot):
        if loop_over_groups:
            src = x_hbm.at[n, j, :, :]   # (cpg, HW): contiguous HBM read
            dst = o_hbm.at[n, :, j, :]   # (cpg, HW): strided HBM write (HW runs)
        else:
            src = x_hbm.at[n, :, j, :]   # (groups, HW): strided HBM read
            dst = o_hbm.at[n, j, :, :]   # (groups, HW): contiguous HBM write
        return pltpu.make_async_copy(src, dst, sems.at[j, slot])

    def start(n, slot):
        for j in range(n_copies):        # static, tiny Python loop
            _copy(n, j, slot).start()

    def wait(slot):
        # Only sizes + semaphore matter for a wait; batch index 0 has the same
        # slice shapes as any other batch.
        for j in range(n_copies):
            _copy(0, j, slot).wait()

    # Prime the pipeline: issue batch 0 into slot 0.
    start(0, 0)

    # Steady state: issue batch n, *then* wait for batch n-1 (1-step lookahead
    # keeps the DMA engines busy across batch boundaries).
    @pl.loop(1, N)
    def _(n):
        slot = n % 2
        start(n, slot)
        wait(1 - slot)

    # Drain: the last batch's copies must land before the kernel exits.
    wait((N - 1) % 2)


# ---------------------------------------------------------------------------
# Path B: VMEM-staged kernel (small H*W), BlockSpec auto-pipelined per batch.
# ---------------------------------------------------------------------------
def _channel_shuffle_vmem_kernel(x_ref, o_ref):
    """x_ref: (1, groups, cpg, HW) VMEM block; o_ref: (1, cpg, groups, HW)."""
    _, groups, cpg, _ = x_ref.shape
    # Static slab-copy loop over the smaller dimension (groups is typically
    # <= 8).  Each iteration is a simple (min_dim-agnostic) 2D slab copy; the
    # relayout is hidden under the HBM-bound input/output DMAs.
    if groups <= cpg:
        for g in range(groups):
            o_ref[0, :, g, :] = x_ref[0, g, :, :]
    else:
        for i in range(cpg):
            o_ref[0, i, :, :] = x_ref[0, :, i, :]


# ---------------------------------------------------------------------------
# Wrapper
# ---------------------------------------------------------------------------
def channel_shuffle(x: jax.Array, groups: int) -> jax.Array:
    """Pallas channel shuffle.  x: (N, C, H, W), C % groups == 0."""
    N, C, H, W = x.shape
    assert C % groups == 0, "channels must be divisible by groups"
    cpg = C // groups
    HW = H * W
    itemsize = jnp.dtype(x.dtype).itemsize

    # Free view of the row-major NCHW layout (x is produced contiguously here).
    x4 = x.reshape(N, groups, cpg, HW)
    out_shape = jax.ShapeDtypeStruct((N, cpg, groups, HW), x.dtype)
    cost = pl.CostEstimate(
        flops=0,
        transcendentals=0,
        bytes_accessed=2 * x.size * itemsize,
    )

    slab_bytes = C * HW * itemsize
    # Small feature maps: HW*itemsize-byte strided HBM runs are too short for
    # good DMA efficiency -> stage the whole per-batch slab through VMEM so
    # both the HBM read and write are one contiguous C*HW transfer each.
    # Budget ~4x slab (in+out, double buffered) against the smallest default
    # scoped VMEM limit (v5e: 16 MiB).
    use_vmem_path = (HW * itemsize < 1024) and (4 * slab_bytes <= 12 * 1024 * 1024)

    if use_vmem_path:
        y4 = pl.pallas_call(
            _channel_shuffle_vmem_kernel,
            out_shape=out_shape,
            grid_spec=pltpu.PrefetchScalarGridSpec(
                num_scalar_prefetch=0,
                grid=(N,),
                in_specs=[pl.BlockSpec((1, groups, cpg, HW),
                                       lambda n: (n, 0, 0, 0))],
                out_specs=pl.BlockSpec((1, cpg, groups, HW),
                                       lambda n: (n, 0, 0, 0)),
            ),
            compiler_params=pltpu.CompilerParams(
                # Batches are independent -> shard across TCs on v7x.
                dimension_semantics=("parallel",),
            ),
            cost_estimate=cost,
        )(x4)
    else:
        n_copies = min(groups, cpg)
        y4 = pl.pallas_call(
            _channel_shuffle_dma_kernel,
            out_shape=out_shape,
            grid_spec=pltpu.PrefetchScalarGridSpec(
                num_scalar_prefetch=0,
                grid=(1,),  # single step; batches are pipelined with pl.loop
                in_specs=[pl.BlockSpec(memory_space=pl.ANY)],
                out_specs=pl.BlockSpec(memory_space=pl.ANY),
                scratch_shapes=[pltpu.SemaphoreType.DMA((n_copies, 2))],
            ),
            compiler_params=pltpu.CompilerParams(
                dimension_semantics=("arbitrary",),
                # Output is written exclusively by manual DMA into an ANY-space
                # ref -- make sure the body is never treated as dead.
                has_side_effects=True,
            ),
            cost_estimate=cost,
        )(x4)

    return y4.reshape(N, C, H, W)  # free view back to NCHW


def channel_shuffle_ref(x: jax.Array, groups: int) -> jax.Array:
    """Pure-JAX reference (mirrors nn.ChannelShuffle / the Triton kernel)."""
    N, C, H, W = x.shape
    cpg = C // groups
    return (
        x.reshape(N, groups, cpg, H, W)
        .transpose(0, 2, 1, 3, 4)
        .reshape(N, C, H, W)
    )


if __name__ == "__main__":
    key = jax.random.PRNGKey(0)

    # Exercise both paths and both copy-loop orientations (plus bf16 / odd N).
    cases = [
        ((2, 4, 16, 16), 2, jnp.float32),   # HW*4 = 1024 B -> DMA path, loop over groups
        ((2, 6, 32, 32), 3, jnp.float32),   # groups > cpg  -> DMA path, loop over cpg
        ((2, 8, 7, 7),   4, jnp.bfloat16),  # tiny HW       -> VMEM path, flipped loop
        ((3, 6, 8, 8),   2, jnp.float32),   # small HW, N=3 -> VMEM path, group loop
    ]

    for shape, groups, dtype in cases:
        key, sub = jax.random.split(key)
        x = jax.random.normal(sub, shape, dtype=jnp.float32).astype(dtype)

        out = jax.block_until_ready(channel_shuffle(x, groups))
        ref = channel_shuffle_ref(x, groups)

        assert out.shape == ref.shape and out.dtype == ref.dtype
        assert jnp.array_equal(out, ref), (
            f"channel shuffle mismatch for shape={shape}, groups={groups}, dtype={dtype}"
        )

    print("KERNEL_OK")
</pallas_src>

<mosaic_0001>
module attributes {stable_mosaic.version = 11 : i64} {
  func.func @_channel_shuffle_dma_kernel(%arg0: i32, %arg1: memref<2x2x2x256xf32, #tpu.memory_space<any>>, %arg2: memref<2x2x2x256xf32, #tpu.memory_space<any>>, %arg3: memref<2x2x!tpu.dma_semaphore, #tpu.memory_space<semaphore_mem>>) attributes {dimension_semantics = [#tpu.dimension_semantics<arbitrary>], iteration_bounds = array<i64: 1>, scalar_prefetch = 0 : i64, scratch_operands = 1 : i64, tpu.core_type = #tpu.core_type<tc>, window_params = [{}, {}]} {
    %c0_i32 = arith.constant 0 : i32
    %c0_i32_0 = arith.constant 0 : i32
    %c0_i32_1 = arith.constant 0 : i32
    %c0_i32_2 = arith.constant 0 : i32
    %c0_i32_3 = arith.constant 0 : i32
    %c0_i32_4 = arith.constant 0 : i32
    %c0_i32_5 = arith.constant 0 : i32
    %c0_i32_6 = arith.constant 0 : i32
    %0 = tpu.memref_slice %arg1[%c0_i32, %c0_i32_0, %c0_i32_5, %c0_i32_6] : memref<2x2x2x256xf32, #tpu.memory_space<any>> -> memref<1x1x2x256xf32, #tpu.memory_space<any>>
    %1 = tpu.memref_squeeze %0 : memref<1x1x2x256xf32, #tpu.memory_space<any>> -> memref<2x256xf32, #tpu.memory_space<any>>
    %c0_i32_7 = arith.constant 0 : i32
    %c0_i32_8 = arith.constant 0 : i32
    %2 = tpu.memref_slice %arg2[%c0_i32_1, %c0_i32_7, %c0_i32_2, %c0_i32_8] : memref<2x2x2x256xf32, #tpu.memory_space<any>> -> memref<1x2x1x256xf32, #tpu.memory_space<any>>
    %3 = tpu.memref_squeeze %2 : memref<1x2x1x256xf32, #tpu.memory_space<any>> -> memref<2x256xf32, #tpu.memory_space<any>>
    %4 = tpu.memref_slice %arg3[%c0_i32_3, %c0_i32_4] : memref<2x2x!tpu.dma_semaphore, #tpu.memory_space<semaphore_mem>> -> memref<1x1x!tpu.dma_semaphore, #tpu.memory_space<semaphore_mem>>
    %5 = tpu.memref_squeeze %4 : memref<1x1x!tpu.dma_semaphore, #tpu.memory_space<semaphore_mem>> -> memref<!tpu.dma_semaphore, #tpu.memory_space<semaphore_mem>>
    tpu.enqueue_dma source(%1 : memref<2x256xf32, #tpu.memory_space<any>>) target(%3 : memref<2x256xf32, #tpu.memory_space<any>>) target_semaphore(%5 : memref<!tpu.dma_semaphore, #tpu.memory_space<semaphore_mem>>)
    %c0_i32_9 = arith.constant 0 : i32
    %c1_i32 = arith.constant 1 : i32
    %c0_i32_10 = arith.constant 0 : i32
    %c1_i32_11 = arith.constant 1 : i32
    %c1_i32_12 = arith.constant 1 : i32
    %c0_i32_13 = arith.constant 0 : i32
    %c0_i32_14 = arith.constant 0 : i32
    %c0_i32_15 = arith.constant 0 : i32
    %6 = tpu.memref_slice %arg1[%c0_i32_9, %c1_i32, %c0_i32_14, %c0_i32_15] : memref<2x2x2x256xf32, #tpu.memory_space<any>> -> memref<1x1x2x256xf32, #tpu.memory_space<any>>
    %7 = tpu.memref_squeeze %6 : memref<1x1x2x256xf32, #tpu.memory_space<any>> -> memref<2x256xf32, #tpu.memory_space<any>>
    %c0_i32_16 = arith.constant 0 : i32
    %c0_i32_17 = arith.constant 0 : i32
    %8 = tpu.memref_slice %arg2[%c0_i32_10, %c0_i32_16, %c1_i32_11, %c0_i32_17] : memref<2x2x2x256xf32, #tpu.memory_space<any>> -> memref<1x2x1x256xf32, #tpu.memory_space<any>>
    %9 = tpu.memref_squeeze %8 : memref<1x2x1x256xf32, #tpu.memory_space<any>> -> memref<2x256xf32, #tpu.memory_space<any>>
    %10 = tpu.memref_slice %arg3[%c1_i32_12, %c0_i32_13] : memref<2x2x!tpu.dma_semaphore, #tpu.memory_space<semaphore_mem>> -> memref<1x1x!tpu.dma_semaphore, #tpu.memory_space<semaphore_mem>>
    %11 = tpu.memref_squeeze %10 : memref<1x1x!tpu.dma_semaphore, #tpu.memory_space<semaphore_mem>> -> memref<!tpu.dma_semaphore, #tpu.memory_space<semaphore_mem>>
    tpu.enqueue_dma source(%7 : memref<2x256xf32, #tpu.memory_space<any>>) target(%9 : memref<2x256xf32, #tpu.memory_space<any>>) target_semaphore(%11 : memref<!tpu.dma_semaphore, #tpu.memory_space<semaphore_mem>>)
    %c0_i32_18 = arith.constant 0 : i32
    %c1_i32_19 = arith.constant 1 : i32
    %12 = arith.muli %c0_i32_18, %c1_i32_19 : i32
    %c1_i32_20 = arith.constant 1 : i32
    %13 = arith.addi %c1_i32_20, %12 : i32
    %c2_i32 = arith.constant 2 : i32
    %c0_i32_21 = arith.constant 0 : i32
    %14 = arith.cmpi eq, %c2_i32, %c0_i32_21 : i32
    %c1_i32_22 = arith.constant 1 : i32
    %15 = arith.select %14, %c1_i32_22, %c2_i32 : i32
    %16 = arith.remsi %13, %15 : i32
    %c0_i32_23 = arith.constant 0 : i32
    %17 = arith.cmpi ne, %16, %c0_i32_23 : i32
    %c0_i32_24 = arith.constant 0 : i32
    %18 = arith.cmpi slt, %16, %c0_i32_24 : i32
    %c0_i32_25 = arith.constant 0 : i32
    %19 = arith.cmpi slt, %15, %c0_i32_25 : i32
    %20 = arith.xori %18, %19 : i1
    %21 = arith.andi %20, %17 : i1
    %22 = arith.addi %16, %15 : i32
    %23 = arith.select %21, %22, %16 : i32
    %c0_i32_26 = arith.constant 0 : i32
    %c0_i32_27 = arith.constant 0 : i32
    %c0_i32_28 = arith.constant 0 : i32
    %c0_i32_29 = arith.constant 0 : i32
    %c0_i32_30 = arith.constant 0 : i32
    %24 = tpu.memref_slice %arg1[%13, %c0_i32_26, %c0_i32_29, %c0_i32_30] : memref<2x2x2x256xf32, #tpu.memory_space<any>> -> memref<1x1x2x256xf32, #tpu.memory_space<any>>
    %25 = tpu.memref_squeeze %24 : memref<1x1x2x256xf32, #tpu.memory_space<any>> -> memref<2x256xf32, #tpu.memory_space<any>>
    %c0_i32_31 = arith.constant 0 : i32
    %c0_i32_32 = arith.constant 0 : i32
    %26 = tpu.memref_slice %arg2[%13, %c0_i32_31, %c0_i32_27, %c0_i32_32] : memref<2x2x2x256xf32, #tpu.memory_space<any>> -> memref<1x2x1x256xf32, #tpu.memory_space<any>>
    %27 = tpu.memref_squeeze %26 : memref<1x2x1x256xf32, #tpu.memory_space<any>> -> memref<2x256xf32, #tpu.memory_space<any>>
    %28 = tpu.memref_slice %arg3[%c0_i32_28, %23] : memref<2x2x!tpu.dma_semaphore, #tpu.memory_space<semaphore_mem>> -> memref<1x1x!tpu.dma_semaphore, #tpu.memory_space<semaphore_mem>>
    %29 = tpu.memref_squeeze %28 : memref<1x1x!tpu.dma_semaphore, #tpu.memory_space<semaphore_mem>> -> memref<!tpu.dma_semaphore, #tpu.memory_space<semaphore_mem>>
    tpu.enqueue_dma source(%25 : memref<2x256xf32, #tpu.memory_space<any>>) target(%27 : memref<2x256xf32, #tpu.memory_space<any>>) target_semaphore(%29 : memref<!tpu.dma_semaphore, #tpu.memory_space<semaphore_mem>>)
    %c1_i32_33 = arith.constant 1 : i32
    %c1_i32_34 = arith.constant 1 : i32
    %c1_i32_35 = arith.constant 1 : i32
    %c0_i32_36 = arith.constant 0 : i32
    %c0_i32_37 = arith.constant 0 : i32
    %30 = tpu.memref_slice %arg1[%13, %c1_i32_33, %c0_i32_36, %c0_i32_37] : memref<2x2x2x256xf32, #tpu.memory_space<any>> -> memref<1x1x2x256xf32, #tpu.memory_space<any>>
    %31 = tpu.memref_squeeze %30 : memref<1x1x2x256xf32, #tpu.memory_space<any>> -> memref<2x256xf32, #tpu.memory_space<any>>
    %c0_i32_38 = arith.constant 0 : i32
    %c0_i32_39 = arith.constant 0 : i32
    %32 = tpu.memref_slice %arg2[%13, %c0_i32_38, %c1_i32_34, %c0_i32_39] : memref<2x2x2x256xf32, #tpu.memory_space<any>> -> memref<1x2x1x256xf32, #tpu.memory_space<any>>
    %33 = tpu.memref_squeeze %32 : memref<1x2x1x256xf32, #tpu.memory_space<any>> -> memref<2x256xf32, #tpu.memory_space<any>>
    %34 = tpu.memref_slice %arg3[%c1_i32_35, %23] : memref<2x2x!tpu.dma_semaphore, #tpu.memory_space<semaphore_mem>> -> memref<1x1x!tpu.dma_semaphore, #tpu.memory_space<semaphore_mem>>
    %35 = tpu.memref_squeeze %34 : memref<1x1x!tpu.dma_semaphore, #tpu.memory_space<semaphore_mem>> -> memref<!tpu.dma_semaphore, #tpu.memory_space<semaphore_mem>>
    tpu.enqueue_dma source(%31 : memref<2x256xf32, #tpu.memory_space<any>>) target(%33 : memref<2x256xf32, #tpu.memory_space<any>>) target_semaphore(%35 : memref<!tpu.dma_semaphore, #tpu.memory_space<semaphore_mem>>)
    %c1_i32_40 = arith.constant 1 : i32
    %36 = arith.subi %c1_i32_40, %23 : i32
    %c0_i32_41 = arith.constant 0 : i32
    %c0_i32_42 = arith.constant 0 : i32
    %c0_i32_43 = arith.constant 0 : i32
    %c0_i32_44 = arith.constant 0 : i32
    %c0_i32_45 = arith.constant 0 : i32
    %c0_i32_46 = arith.constant 0 : i32
    %c0_i32_47 = arith.constant 0 : i32
    %37 = tpu.memref_slice %arg1[%c0_i32_41, %c0_i32_42, %c0_i32_46, %c0_i32_47] : memref<2x2x2x256xf32, #tpu.memory_space<any>> -> memref<1x1x2x256xf32, #tpu.memory_space<any>>
    %38 = tpu.memref_squeeze %37 : memref<1x1x2x256xf32, #tpu.memory_space<any>> -> memref<2x256xf32, #tpu.memory_space<any>>
    %c0_i32_48 = arith.constant 0 : i32
    %c0_i32_49 = arith.constant 0 : i32
    %39 = tpu.memref_slice %arg2[%c0_i32_43, %c0_i32_48, %c0_i32_44, %c0_i32_49] : memref<2x2x2x256xf32, #tpu.memory_space<any>> -> memref<1x2x1x256xf32, #tpu.memory_space<any>>
    %40 = tpu.memref_squeeze %39 : memref<1x2x1x256xf32, #tpu.memory_space<any>> -> memref<2x256xf32, #tpu.memory_space<any>>
    %41 = tpu.memref_slice %arg3[%c0_i32_45, %36] : memref<2x2x!tpu.dma_semaphore, #tpu.memory_space<semaphore_mem>> -> memref<1x1x!tpu.dma_semaphore, #tpu.memory_space<semaphore_mem>>
    %42 = tpu.memref_squeeze %41 : memref<1x1x!tpu.dma_semaphore, #tpu.memory_space<semaphore_mem>> -> memref<!tpu.dma_semaphore, #tpu.memory_space<semaphore_mem>>
    tpu.wait_dma2 semaphore(%42 : memref<!tpu.dma_semaphore, #tpu.memory_space<semaphore_mem>>) src(%38 : memref<2x256xf32, #tpu.memory_space<any>>) dst(%40 : memref<2x256xf32, #tpu.memory_space<any>>)
    %c0_i32_50 = arith.constant 0 : i32
    %c1_i32_51 = arith.constant 1 : i32
    %c0_i32_52 = arith.constant 0 : i32
    %c1_i32_53 = arith.constant 1 : i32
    %c1_i32_54 = arith.constant 1 : i32
    %c0_i32_55 = arith.constant 0 : i32
    %c0_i32_56 = arith.constant 0 : i32
    %43 = tpu.memref_slice %arg1[%c0_i32_50, %c1_i32_51, %c0_i32_55, %c0_i32_56] : memref<2x2x2x256xf32, #tpu.memory_space<any>> -> memref<1x1x2x256xf32, #tpu.memory_space<any>>
    %44 = tpu.memref_squeeze %43 : memref<1x1x2x256xf32, #tpu.memory_space<any>> -> memref<2x256xf32, #tpu.memory_space<any>>
    %c0_i32_57 = arith.constant 0 : i32
    %c0_i32_58 = arith.constant 0 : i32
    %45 = tpu.memref_slice %arg2[%c0_i32_52, %c0_i32_57, %c1_i32_53, %c0_i32_58] : memref<2x2x2x256xf32, #tpu.memory_space<any>> -> memref<1x2x1x256xf32, #tpu.memory_space<any>>
    %46 = tpu.memref_squeeze %45 : memref<1x2x1x256xf32, #tpu.memory_space<any>> -> memref<2x256xf32, #tpu.memory_space<any>>
    %47 = tpu.memref_slice %arg3[%c1_i32_54, %36] : memref<2x2x!tpu.dma_semaphore, #tpu.memory_space<semaphore_mem>> -> memref<1x1x!tpu.dma_semaphore, #tpu.memory_space<semaphore_mem>>
    %48 = tpu.memref_squeeze %47 : memref<1x1x!tpu.dma_semaphore, #tpu.memory_space<semaphore_mem>> -> memref<!tpu.dma_semaphore, #tpu.memory_space<semaphore_mem>>
    tpu.wait_dma2 semaphore(%48 : memref<!tpu.dma_semaphore, #tpu.memory_space<semaphore_mem>>) src(%44 : memref<2x256xf32, #tpu.memory_space<any>>) dst(%46 : memref<2x256xf32, #tpu.memory_space<any>>)
    %c1_i32_59 = arith.constant 1 : i32
    %c0_i32_60 = arith.constant 0 : i32
    %c0_i32_61 = arith.constant 0 : i32
    %c0_i32_62 = arith.constant 0 : i32
    %c0_i32_63 = arith.constant 0 : i32
    %c0_i32_64 = arith.constant 0 : i32
    %c1_i32_65 = arith.constant 1 : i32
    %c0_i32_66 = arith.constant 0 : i32
    %c0_i32_67 = arith.constant 0 : i32
    %49 = tpu.memref_slice %arg1[%c0_i32_60, %c0_i32_61, %c0_i32_66, %c0_i32_67] : memref<2x2x2x256xf32, #tpu.memory_space<any>> -> memref<1x1x2x256xf32, #tpu.memory_space<any>>
    %50 = tpu.memref_squeeze %49 : memref<1x1x2x256xf32, #tpu.memory_space<any>> -> memref<2x256xf32, #tpu.memory_space<any>>
    %c0_i32_68 = arith.constant 0 : i32
    %c0_i32_69 = arith.constant 0 : i32
    %51 = tpu.memref_slice %arg2[%c0_i32_62, %c0_i32_68, %c0_i32_63, %c0_i32_69] : memref<2x2x2x256xf32, #tpu.memory_space<any>> -> memref<1x2x1x256xf32, #tpu.memory_space<any>>
    %52 = tpu.memref_squeeze %51 : memref<1x2x1x256xf32, #tpu.memory_space<any>> -> memref<2x256xf32, #tpu.memory_space<any>>
    %53 = tpu.memref_slice %arg3[%c0_i32_64, %c1_i32_65] : memref<2x2x!tpu.dma_semaphore, #tpu.memory_space<semaphore_mem>> -> memref<1x1x!tpu.dma_semaphore, #tpu.memory_space<semaphore_mem>>
    %54 = tpu.memref_squeeze %53 : memref<1x1x!tpu.dma_semaphore, #tpu.memory_space<semaphore_mem>> -> memref<!tpu.dma_semaphore, #tpu.memory_space<semaphore_mem>>
    tpu.wait_dma2 semaphore(%54 : memref<!tpu.dma_semaphore, #tpu.memory_space<semaphore_mem>>) src(%50 : memref<2x256xf32, #tpu.memory_space<any>>) dst(%52 : memref<2x256xf32, #tpu.memory_space<any>>)
    %c0_i32_70 = arith.constant 0 : i32
    %c1_i32_71 = arith.constant 1 : i32
    %c0_i32_72 = arith.constant 0 : i32
    %c1_i32_73 = arith.constant 1 : i32
    %c1_i32_74 = arith.constant 1 : i32
    %c1_i32_75 = arith.constant 1 : i32
    %c0_i32_76 = arith.constant 0 : i32
    %c0_i32_77 = arith.constant 0 : i32
    %55 = tpu.memref_slice %arg1[%c0_i32_70, %c1_i32_71, %c0_i32_76, %c0_i32_77] : memref<2x2x2x256xf32, #tpu.memory_space<any>> -> memref<1x1x2x256xf32, #tpu.memory_space<any>>
    %56 = tpu.memref_squeeze %55 : memref<1x1x2x256xf32, #tpu.memory_space<any>> -> memref<2x256xf32, #tpu.memory_space<any>>
    %c0_i32_78 = arith.constant 0 : i32
    %c0_i32_79 = arith.constant 0 : i32
    %57 = tpu.memref_slice %arg2[%c0_i32_72, %c0_i32_78, %c1_i32_73, %c0_i32_79] : memref<2x2x2x256xf32, #tpu.memory_space<any>> -> memref<1x2x1x256xf32, #tpu.memory_space<any>>
    %58 = tpu.memref_squeeze %57 : memref<1x2x1x256xf32, #tpu.memory_space<any>> -> memref<2x256xf32, #tpu.memory_space<any>>
    %59 = tpu.memref_slice %arg3[%c1_i32_74, %c1_i32_75] : memref<2x2x!tpu.dma_semaphore, #tpu.memory_space<semaphore_mem>> -> memref<1x1x!tpu.dma_semaphore, #tpu.memory_space<semaphore_mem>>
    %60 = tpu.memref_squeeze %59 : memref<1x1x!tpu.dma_semaphore, #tpu.memory_space<semaphore_mem>> -> memref<!tpu.dma_semaphore, #tpu.memory_space<semaphore_mem>>
    tpu.wait_dma2 semaphore(%60 : memref<!tpu.dma_semaphore, #tpu.memory_space<semaphore_mem>>) src(%56 : memref<2x256xf32, #tpu.memory_space<any>>) dst(%58 : memref<2x256xf32, #tpu.memory_space<any>>)
    return
  }
}

</mosaic_0001>

<llo_original>
// kernel: tpu_custom_call.1
$region0: #{tpu_custom_call.1}
  #allocation0 [shape = 'u32[]', space=smem, size = 0x4, offset = 0x4, fixed_abs, tag = 'smem constant byte address 0x4 - core index']
  #allocation1 [shape = 'u32[144,128]{1,0:T(1,128)}', space=vmem, size = 0x12000, scoped, tag = 'internal scratch']
  #allocation2 [shape = 's32[4]{0}', space=sflag, size = 0x10, scoped, tag = 'scratch operand']
  #allocation3 [shape = 's32[]', space=sflag, size = 0x4, offset = 0, fixed_abs, tag = 'sflag constant byte address 0x0 - dummy sync flag']
  #allocation5 [shape = 's32[]', space=sflag, size = 0x4, offset = 0, fixed_abs, tag = 'sflag constant byte address 0x0 - dummy sync flag']
  #allocation7 [shape = 's32[]', space=sflag, size = 0x4, offset = 0, fixed_abs, tag = 'sflag constant byte address 0x0 - dummy sync flag']
  #allocation9 [shape = 's32[]', space=sflag, size = 0x4, offset = 0, fixed_abs, tag = 'sflag constant byte address 0x0 - dummy sync flag']
  %s0 = inlined_call_operand.hbm [shape: f32[2,2,2,256], index: 0, kind: input, shape index: {}]
  %s1 = inlined_call_operand.hbm [shape: f32[2,2,2,256], index: 1, kind: output, shape index: {}]
  %s2 = sld [smem:[#allocation0]]
  $region2: #{tpu_custom_call.1} parent=0
    _
  %s4 = ssub.s32 1, %s2
  %s5 = scalar_select 0, %s4, %s2
  $region1: #{tpu_custom_call.1} parent=0
    #allocation4 [shape = 'u32[6]{0}', space=smem, size = 0x18, scoped, tag = 'DMA stride descriptor']
    #allocation6 [shape = 'u32[6]{0}', space=smem, size = 0x18, scoped, tag = 'DMA stride descriptor']
    #allocation8 [shape = 'u32[6]{0}', space=smem, size = 0x18, scoped, tag = 'DMA stride descriptor']
    #allocation10 [shape = 'u32[6]{0}', space=smem, size = 0x18, scoped, tag = 'DMA stride descriptor']
    %s7 = sshll.u32 1, 14
    %s8 = sxor.u32 4294967295, %s7
    %12 = sst [smem:[#allocation4]] 32
    %s13 = scalar_lea.smem [#allocation4], 1
    %14 = sst [smem:[%s13]] 32
    %s15 = scalar_lea.smem [#allocation4], 2
    %16 = sst [smem:[%s15]] 2
    %s17 = scalar_lea.smem [#allocation4], 3
    %18 = sst [smem:[%s17]] 16
    %s19 = scalar_lea.smem [#allocation4], 4
    %20 = sst [smem:[%s19]] 64
    %s21 = scalar_lea.smem [#allocation4], 5
    %22 = sst [smem:[%s21]] 1
    %24 = dma.general %s0, 64, %s1, [#allocation2], 131072, [#allocation4], 0, 0
    %s25 = scalar_lea.hbm %s0, 64
    %s26 = scalar_lea.hbm %s1, 16
    %s27 = scalar_lea.sflag [#allocation2], 2
    %s29 = sshll.u32 1, 14
    %s30 = sxor.u32 4294967295, %s29
    %34 = sst [smem:[#allocation6]] 32
    %s35 = scalar_lea.smem [#allocation6], 1
    %36 = sst [smem:[%s35]] 32
    %s37 = scalar_lea.smem [#allocation6], 2
    %38 = sst [smem:[%s37]] 2
    %s39 = scalar_lea.smem [#allocation6], 3
    %40 = sst [smem:[%s39]] 16
    %s41 = scalar_lea.smem [#allocation6], 4
    %42 = sst [smem:[%s41]] 64
    %s43 = scalar_lea.smem [#allocation6], 5
    %44 = sst [smem:[%s43]] 1
    %46 = dma.general %s25, 64, %s26, %s27, 131072, [#allocation6], 0, 0
    %s47 = scalar_lea.hbm %s0, 128
    %s48 = scalar_lea.hbm %s1, 128
    %s49 = scalar_lea.sflag [#allocation2], 1
    %s51 = sshll.u32 1, 14
    %s52 = sxor.u32 4294967295, %s51
    %56 = sst [smem:[#allocation8]] 32
    %s57 = scalar_lea.smem [#allocation8], 1
    %58 = sst [smem:[%s57]] 32
    %s59 = scalar_lea.smem [#allocation8], 2
    %60 = sst [smem:[%s59]] 2
    %s61 = scalar_lea.smem [#allocation8], 3
    %62 = sst [smem:[%s61]] 16
    %s63 = scalar_lea.smem [#allocation8], 4
    %64 = sst [smem:[%s63]] 64
    %s65 = scalar_lea.smem [#allocation8], 5
    %66 = sst [smem:[%s65]] 1
    %68 = dma.general %s47, 64, %s48, %s49, 131072, [#allocation8], 0, 0
    %s69 = scalar_lea.hbm %s0, 192
    %s70 = scalar_lea.hbm %s1, 144
    %s71 = scalar_lea.sflag [#allocation2], 3
    %s73 = sshll.u32 1, 14
    %s74 = sxor.u32 4294967295, %s73
    %78 = sst [smem:[#allocation10]] 32
    %s79 = scalar_lea.smem [#allocation10], 1
    %80 = sst [smem:[%s79]] 32
    %s81 = scalar_lea.smem [#allocation10], 2
    %82 = sst [smem:[%s81]] 2
    %s83 = scalar_lea.smem [#allocation10], 3
    %84 = sst [smem:[%s83]] 16
    %s85 = scalar_lea.smem [#allocation10], 4
    %86 = sst [smem:[%s85]] 64
    %s87 = scalar_lea.smem [#allocation10], 5
    %88 = sst [smem:[%s87]] 1
    %90 = dma.general %s69, 64, %s70, %s71, 131072, [#allocation10], 0, 0
    %s91 = smul.u32 2, 2
    %s92 = sshll.u32 %s91, 4
    %93 = dma.done [#allocation2], %s92
    %s94 = sshll.u32 %s91, 4
    %95 = dma.done %s27, %s94
    %s96 = sshll.u32 %s91, 4
    %97 = dma.done %s49, %s96
    %s98 = sshll.u32 %s91, 4
    %99 = dma.done %s71, %s98
  %100 = vsyncmov [#allocation2]
  %s101 = vpop.sfrf %100
  %p102 = scmp.eq.s32.totalorder %s101, 0
  %p103 = pneg %p102
  %105 = shalt.err (%p103)
  %s106 = scalar_lea.sflag [#allocation2], 1
  %107 = vsyncmov %s106
  %s108 = vpop.sfrf %107
  %p109 = scmp.eq.s32.totalorder %s108, 0
  %p110 = pneg %p109
  %112 = shalt.err (%p110)
  %s113 = scalar_lea.sflag [#allocation2], 2
  %114 = vsyncmov %s113
  %s115 = vpop.sfrf %114
  %p116 = scmp.eq.s32.totalorder %s115, 0
  %p117 = pneg %p116
  %119 = shalt.err (%p117)
  %s120 = scalar_lea.sflag [#allocation2], 3
  %121 = vsyncmov %s120
  %s122 = vpop.sfrf %121
  %p123 = scmp.eq.s32.totalorder %s122, 0
  %p124 = pneg %p123
  %126 = shalt.err (%p124)

</llo_original>
